<compile_context>
chip_gen: v5e
topology: v5e:2x2
jax: 0.10.0
libtpu: 0.0.40
codegen_flags: <defaults>
</compile_context>

<pallas_src>
import functools

import jax
import jax.numpy as jnp
from jax.experimental import pallas as pl
from jax.experimental.pallas import tpu as pltpu

HIDDEN = 32          # nn.Linear(in_dim, 32) -> nn.Linear(32, 32) -> nn.Linear(32, out_dim)
TILE_B_MAX = 1024    # batch tile; multiple of 8 (f32 sublanes), sized for v7x's 32 MiB scoped VMEM


def _mlp_kernel(x_ref, w1_ref, w2_ref, w3_ref, o_ref):
    # Linear(in_dim, 32, bias=False) -> ReLU   (f32 MXU accumulate, f32 VPU relu)
    h1 = jnp.maximum(
        jnp.dot(x_ref[...], w1_ref[...], preferred_element_type=jnp.float32), 0.0)
    # Linear(32, 32, bias=False) -> ReLU
    h2 = jnp.maximum(
        jnp.dot(h1, w2_ref[...], preferred_element_type=jnp.float32), 0.0)
    # Linear(32, out_dim, bias=False)
    out = jnp.dot(h2, w3_ref[...], preferred_element_type=jnp.float32)
    o_ref[...] = out.astype(o_ref.dtype)


@jax.jit
def mlp_forward(x, w1, w2, w3):
    """x: (B, in_dim); w1: (32, in_dim); w2: (32, 32); w3: (out_dim, 32)
    (PyTorch nn.Linear weight layout: (out_features, in_features)).
    Returns (B, out_dim)."""
    B, in_dim = x.shape
    out_dim = w3.shape[0]

    # Pre-transpose to (in, out) so the kernel does plain x @ W.
    # Under jit these fold into the graph once; no per-call transpose launches.
    w1_t = w1.T  # (in_dim, HIDDEN)
    w2_t = w2.T  # (HIDDEN, HIDDEN)
    w3_t = w3.T  # (HIDDEN, out_dim)

    # Batch tile: as large as possible (amortizes ~0.35us/step overhead),
    # always a multiple of 8 so the block satisfies the (8, 128) sublane rule.
    tile_b = min(TILE_B_MAX, ((B + 7) // 8) * 8)
    num_tiles = pl.cdiv(B, tile_b)
    padded_b = num_tiles * tile_b

    # Zero-pad the ragged tail so every tile is full (zeros -> zeros through the MLP).
    x_p = x if padded_b == B else jnp.pad(x, ((0, padded_b - B), (0, 0)))

    out_p = pl.pallas_call(
        _mlp_kernel,
        out_shape=jax.ShapeDtypeStruct((padded_b, out_dim), x.dtype),
        grid=(num_tiles,),
        in_specs=[
            # x tile marches along the batch; weights stay resident in VMEM.
            pl.BlockSpec((tile_b, in_dim), lambda i: (i, 0)),
            pl.BlockSpec((in_dim, HIDDEN), lambda i: (0, 0)),
            pl.BlockSpec((HIDDEN, HIDDEN), lambda i: (0, 0)),
            pl.BlockSpec((HIDDEN, out_dim), lambda i: (0, 0)),
        ],
        out_specs=pl.BlockSpec((tile_b, out_dim), lambda i: (i, 0)),
        compiler_params=pltpu.CompilerParams(
            dimension_semantics=("parallel",),  # shard batch tiles across TCs on v7x
        ),
    )(x_p, w1_t, w2_t, w3_t)

    return out_p if padded_b == B else out_p[:B]


def reference_mlp(x, w1, w2, w3):
    h1 = jnp.maximum(x @ w1.T, 0.0)
    h2 = jnp.maximum(h1 @ w2.T, 0.0)
    return h2 @ w3.T


if __name__ == "__main__":
    key = jax.random.PRNGKey(0)
    B, in_dim, out_dim = 8, 16, 8

    kx, k1, k2, k3 = jax.random.split(key, 4)
    x = jax.random.normal(kx, (B, in_dim), dtype=jnp.float32)
    # Deterministic parameter init (Kaiming-uniform-ish bounds like torch defaults).
    w1 = jax.random.uniform(k1, (HIDDEN, in_dim), jnp.float32,
                            minval=-1.0 / (in_dim ** 0.5), maxval=1.0 / (in_dim ** 0.5))
    w2 = jax.random.uniform(k2, (HIDDEN, HIDDEN), jnp.float32,
                            minval=-1.0 / (HIDDEN ** 0.5), maxval=1.0 / (HIDDEN ** 0.5))
    w3 = jax.random.uniform(k3, (out_dim, HIDDEN), jnp.float32,
                            minval=-1.0 / (HIDDEN ** 0.5), maxval=1.0 / (HIDDEN ** 0.5))

    out = mlp_forward(x, w1, w2, w3)
    jax.block_until_ready(out)

    ref = reference_mlp(x, w1, w2, w3)
    assert out.shape == (B, out_dim)
    assert jnp.allclose(out, ref, atol=1e-5, rtol=1e-5), "mismatch vs reference"

    # Also exercise the ragged-batch (tail padding) path once.
    B2 = 20
    x2 = jax.random.normal(jax.random.PRNGKey(1), (B2, in_dim), dtype=jnp.float32)
    out2 = mlp_forward(x2, w1, w2, w3)
    jax.block_until_ready(out2)
    ref2 = reference_mlp(x2, w1, w2, w3)
    assert out2.shape == (B2, out_dim)
    assert jnp.allclose(out2, ref2, atol=1e-5, rtol=1e-5), "mismatch vs reference (ragged B)"

    print("KERNEL_OK")
</pallas_src>

<mosaic_0001>
module attributes {stable_mosaic.version = 11 : i64} {
  func.func @_mlp_kernel(%arg0: i32, %arg1: memref<8x16xf32, #tpu.memory_space<vmem>>, %arg2: memref<16x32xf32, #tpu.memory_space<vmem>>, %arg3: memref<32x32xf32, #tpu.memory_space<vmem>>, %arg4: memref<32x8xf32, #tpu.memory_space<vmem>>, %arg5: memref<8x8xf32, #tpu.memory_space<vmem>>) attributes {dimension_semantics = [#tpu.dimension_semantics<parallel>], iteration_bounds = array<i64: 1>, scalar_prefetch = 0 : i64, scratch_operands = 0 : i64, tpu.core_type = #tpu.core_type<tc>, window_params = [{transform_indices = @transform_0, window_bounds = array<i64: 8, 16>}, {pipeline_mode = #tpu.pipeline_mode<synchronous>, transform_indices = @transform_1, window_bounds = array<i64: 16, 32>}, {pipeline_mode = #tpu.pipeline_mode<synchronous>, transform_indices = @transform_2, window_bounds = array<i64: 32, 32>}, {pipeline_mode = #tpu.pipeline_mode<synchronous>, transform_indices = @transform_3, window_bounds = array<i64: 32, 8>}, {transform_indices = @transform_4, window_bounds = array<i64: 8, 8>}]} {
    %c0 = arith.constant 0 : index
    %c0_0 = arith.constant 0 : index
    %0 = vector.load %arg1[%c0, %c0_0] : memref<8x16xf32, #tpu.memory_space<vmem>>, vector<8x16xf32>
    %c0_1 = arith.constant 0 : index
    %c0_2 = arith.constant 0 : index
    %1 = vector.load %arg2[%c0_1, %c0_2] : memref<16x32xf32, #tpu.memory_space<vmem>>, vector<16x32xf32>
    %cst = arith.constant dense<0.000000e+00> : vector<8x32xf32>
    %2 = tpu.matmul %0, %1, %cst {dimension_numbers = #tpu.dot_dimension_numbers<[1], [0], [0], [1], [0, 0, 1, 1], [], []>} : vector<8x16xf32>, vector<16x32xf32>, vector<8x32xf32> -> vector<8x32xf32>
    %cst_3 = arith.constant 0.000000e+00 : f32
    %3 = vector.broadcast %cst_3 : f32 to vector<8x32xf32>
    %4 = arith.maximumf %2, %3 : vector<8x32xf32>
    %c0_4 = arith.constant 0 : index
    %c0_5 = arith.constant 0 : index
    %5 = vector.load %arg3[%c0_4, %c0_5] : memref<32x32xf32, #tpu.memory_space<vmem>>, vector<32x32xf32>
    %cst_6 = arith.constant dense<0.000000e+00> : vector<8x32xf32>
    %6 = tpu.matmul %4, %5, %cst_6 {dimension_numbers = #tpu.dot_dimension_numbers<[1], [0], [0], [1], [0, 0, 1, 1], [], []>} : vector<8x32xf32>, vector<32x32xf32>, vector<8x32xf32> -> vector<8x32xf32>
    %cst_7 = arith.constant 0.000000e+00 : f32
    %7 = vector.broadcast %cst_7 : f32 to vector<8x32xf32>
    %8 = arith.maximumf %6, %7 : vector<8x32xf32>
    %c0_8 = arith.constant 0 : index
    %c0_9 = arith.constant 0 : index
    %9 = vector.load %arg4[%c0_8, %c0_9] : memref<32x8xf32, #tpu.memory_space<vmem>>, vector<32x8xf32>
    %cst_10 = arith.constant dense<0.000000e+00> : vector<8x8xf32>
    %10 = tpu.matmul %8, %9, %cst_10 {dimension_numbers = #tpu.dot_dimension_numbers<[1], [0], [0], [1], [0, 0, 1, 1], [], []>} : vector<8x32xf32>, vector<32x8xf32>, vector<8x8xf32> -> vector<8x8xf32>
    %c0_11 = arith.constant 0 : index
    %c0_12 = arith.constant 0 : index
    %11 = vector.load %arg5[%c0_11, %c0_12] : memref<8x8xf32, #tpu.memory_space<vmem>>, vector<8x8xf32>
    tpu.vector_store %arg5[%c0_11, %c0_12], %10 {strides = array<i32>} : memref<8x8xf32, #tpu.memory_space<vmem>>, vector<8x8xf32>,
    return
  }
  func.func @transform_0(%arg0: i32) -> (i32, i32) {
    %c0_i32 = arith.constant 0 : i32
    %c0_i32_0 = arith.constant 0 : i32
    return %arg0, %c0_i32 : i32, i32
  }
  func.func @transform_1(%arg0: i32) -> (i32, i32) {
    %c0_i32 = arith.constant 0 : i32
    %c0_i32_0 = arith.constant 0 : i32
    %c0_i32_1 = arith.constant 0 : i32
    return %c0_i32, %c0_i32_0 : i32, i32
  }
  func.func @transform_2(%arg0: i32) -> (i32, i32) {
    %c0_i32 = arith.constant 0 : i32
    %c0_i32_0 = arith.constant 0 : i32
    %c0_i32_1 = arith.constant 0 : i32
    return %c0_i32, %c0_i32_0 : i32, i32
  }
  func.func @transform_3(%arg0: i32) -> (i32, i32) {
    %c0_i32 = arith.constant 0 : i32
    %c0_i32_0 = arith.constant 0 : i32
    %c0_i32_1 = arith.constant 0 : i32
    return %c0_i32, %c0_i32_0 : i32, i32
  }
  func.func @transform_4(%arg0: i32) -> (i32, i32) {
    %c0_i32 = arith.constant 0 : i32
    %c0_i32_0 = arith.constant 0 : i32
    return %arg0, %c0_i32 : i32, i32
  }
}

</mosaic_0001>

<llo_original>
// kernel: mlp_forward.1
$region0: #{mlp_forward.1}
  #allocation0 [shape = 'u32[]', space=smem, size = 0x4, offset = 0x4, fixed_abs, tag = 'smem constant byte address 0x4 - core index']
  #allocation1 [shape = 'u32[72,128]{1,0:T(1,128)}', space=vmem, size = 0x9000, scoped, tag = 'internal scratch']
  %s0 = inlined_call_operand.vmem [shape: f32[8,16], index: 0, kind: input, shape index: {}]
  %s1 = inlined_call_operand.vmem [shape: f32[16,32], index: 1, kind: input, shape index: {}]
  %s2 = inlined_call_operand.vmem [shape: f32[32,32], index: 2, kind: input, shape index: {}]
  %s3 = inlined_call_operand.vmem [shape: f32[32,8], index: 3, kind: input, shape index: {}]
  %s4 = inlined_call_operand.hbm [shape: f32[8,8], index: 4, kind: output, shape index: {}]
  %s5 = sld [smem:[#allocation0]]
  $region26: #{mlp_forward.1} parent=0
    _
  %s7 = ssub.s32 1, %s5
  %s8 = scalar_select 0, %s7, %s5
  $region1: #{mlp_forward.1} parent=0
    #allocation2 [shape = 'u8[4096]{0}', space=vmem, size = 0x1000, scoped, tag = 'output window, operand 0, single buffered']
    #allocation3 [shape = 's32[1]{0}', space=sflag, size = 0x4, scoped, tag = 'scoped memory for mlp_forward.1']
    %9 = vsyncpa [#allocation3], 0
    // Predicated region
    $region2: #{mlp_forward.1} parent=1 // pred_check
      _
    $region3: #{mlp_forward.1} parent=1 // pred_check_branch
      %11 = sbr.rel (0) target = $region5
    $region4: #{mlp_forward.1} parent=1 // pred_region
      _
    $region5: #{mlp_forward.1} parent=1 // pred_fallthru
      _
    // Predicated region
    $region6: #{mlp_forward.1} parent=1 // pred_check
      _
    $region7: #{mlp_forward.1} parent=1 // pred_check_branch
      %13 = sbr.rel (0) target = $region9
    $region8: #{mlp_forward.1} parent=1 // pred_region
      _
    $region9: #{mlp_forward.1} parent=1 // pred_fallthru
      _
    // Predicated region
    $region10: #{mlp_forward.1} parent=1 // pred_check
      _
    $region11: #{mlp_forward.1} parent=1 // pred_check_branch
      %15 = sbr.rel (0) target = $region13
    $region12: #{mlp_forward.1} parent=1 // pred_region
      _
    $region13: #{mlp_forward.1} parent=1 // pred_fallthru
      _
    // Predicated region
    $region14: #{mlp_forward.1} parent=1 // pred_check
      _
    $region15: #{mlp_forward.1} parent=1 // pred_check_branch
      %17 = sbr.rel (0) target = $region17
    $region16: #{mlp_forward.1} parent=1 // pred_region
      _
    $region17: #{mlp_forward.1} parent=1 // pred_fallthru
      _
    %v18 = vld [vmem:[%s0] sm:$0xff]
    %v19 = vld [vmem:[%s1] sm:$0xff]
    %v20 = vld [vmem:[%s1 + $0x8] sm:$0xff]
    %vm21 = vcmask 130048
    %v23 = vsel %vm21, %v18, 0
    %25 = vmatpush.msra.mxu0 0.0
    %26 = vmatpush.msra.mxu0 0.0
    %27 = vmatpush.msra.mxu0 0.0
    %28 = vmatpush.msra.mxu0 0.0
    %29 = vmatpush.msra.mxu0 0.0
    %30 = vmatpush.msra.mxu0 0.0
    %31 = vmatpush.msra.mxu0 0.0
    %32 = vmatpush.msra.mxu0 0.0
    %33 = vmatpush.msra.mxu0 0.0
    %34 = vmatpush.msra.mxu0 0.0
    %35 = vmatpush.msra.mxu0 0.0
    %36 = vmatpush.msra.mxu0 0.0
    %37 = vmatpush.msra.mxu0 0.0
    %38 = vmatpush.msra.mxu0 0.0
    %39 = vmatpush.msra.mxu0 %v20
    %40 = vmatpush.msra.mxu0 %v19
    %41 = vmatmul.f32.gmra.mxu0 %v23
    %v42 = vpop.f32.mrf.mxu0
    %v43 = vadd.f32 0.0, %v42
    %44 = vdwg.mxu0
    %v45 = vmax.f32 %v43, 0.0
    %v46 = vld [vmem:[%s2] sm:$0xff]
    %v47 = vld [vmem:[%s2 + $0x8] sm:$0xff]
    %v48 = vld [vmem:[%s2 + $0x10] sm:$0xff]
    %v49 = vld [vmem:[%s2 + $0x18] sm:$0xff]
    %vm50 = vcmask 261120
    %v52 = vsel %vm50, %v45, 0
    %54 = vmatpush.msra.mxu0 0.0
    %55 = vmatpush.msra.mxu0 0.0
    %56 = vmatpush.msra.mxu0 0.0
    %57 = vmatpush.msra.mxu0 0.0
    %58 = vmatpush.msra.mxu0 0.0
    %59 = vmatpush.msra.mxu0 0.0
    %60 = vmatpush.msra.mxu0 0.0
    %61 = vmatpush.msra.mxu0 0.0
    %62 = vmatpush.msra.mxu0 0.0
    %63 = vmatpush.msra.mxu0 0.0
    %64 = vmatpush.msra.mxu0 0.0
    %65 = vmatpush.msra.mxu0 0.0
    %66 = vmatpush.msra.mxu0 %v49
    %67 = vmatpush.msra.mxu0 %v48
    %68 = vmatpush.msra.mxu0 %v47
    %69 = vmatpush.msra.mxu0 %v46
    %70 = vmatmul.f32.gmra.mxu0 %v52
    %v71 = vpop.f32.mrf.mxu0
    %v72 = vadd.f32 0.0, %v71
    %73 = vdwg.mxu0
    %v74 = vmax.f32 %v72, 0.0
    %v75 = vld [vmem:[%s3] sm:$0xff]
    %v76 = vld [vmem:[%s3 + $0x8] sm:$0xff]
    %v77 = vld [vmem:[%s3 + $0x10] sm:$0xff]
    %v78 = vld [vmem:[%s3 + $0x18] sm:$0xff]
    %v80 = vsel %vm50, %v74, 0
    %82 = vmatpush.msra.mxu0 0.0
    %83 = vmatpush.msra.mxu0 0.0
    %84 = vmatpush.msra.mxu0 0.0
    %85 = vmatpush.msra.mxu0 0.0
    %86 = vmatpush.msra.mxu0 0.0
    %87 = vmatpush.msra.mxu0 0.0
    %88 = vmatpush.msra.mxu0 0.0
    %89 = vmatpush.msra.mxu0 0.0
    %90 = vmatpush.msra.mxu0 0.0
    %91 = vmatpush.msra.mxu0 0.0
    %92 = vmatpush.msra.mxu0 0.0
    %93 = vmatpush.msra.mxu0 0.0
    %94 = vmatpush.msra.mxu0 %v78
    %95 = vmatpush.msra.mxu0 %v77
    %96 = vmatpush.msra.mxu0 %v76
    %97 = vmatpush.msra.mxu0 %v75
    %98 = vmatmul.f32.gmra.mxu0 %v80
    %v99 = vpop.f32.mrf.mxu0
    %v100 = vadd.f32 0.0, %v99
    %101 = vdwg.mxu0
    %vm102 = vcmask 64512
    %103 = vst.msk [vmem:[#allocation2] sm:$0xff] %vm102, %v100
    // Predicated region
    $region18: #{mlp_forward.1} parent=1 // pred_check
      _
    $region19: #{mlp_forward.1} parent=1 // pred_check_branch
      %105 = sbr.rel (0) target = $region21
    $region20: #{mlp_forward.1} parent=1 // pred_region
      %107 = vsyncadd [#allocation3], 0
      %s109 = sshll.u32 [#allocation2], 4
      %s110 = int_to_ptr.vmem [resolvable:$true] %s109
      %s111 = sshll.u32 %s4, 4
      %s112 = int_to_ptr.hbm [resolvable:$true] %s111
      %114 = dma.vmem_to_hbm [thread:$0]  %s110, 128, %s112, [#allocation3]
    $region21: #{mlp_forward.1} parent=1 // pred_fallthru
      _
    // Predicated region
    $region22: #{mlp_forward.1} parent=1 // pred_check
      _
    $region23: #{mlp_forward.1} parent=1 // pred_check_branch
      %116 = sbr.rel (0) target = $region25
    $region24: #{mlp_forward.1} parent=1 // pred_region
      %118 = dma.done [#allocation3], 128
    $region25: #{mlp_forward.1} parent=1 // pred_fallthru
      _
    %119 = vsyncpa [#allocation3], 1

</llo_original>
